<compile_context>
chip_gen: v7x
topology: tpu7x:2x2x1
jax: 0.10.0
libtpu: 0.0.40
codegen_flags: <defaults>
</compile_context>

<pallas_src>
import functools

import jax
import jax.numpy as jnp
from jax.experimental import pallas as pl
from jax.experimental.pallas import tpu as pltpu


def _round_up(a, b):
    return (a + b - 1) // b * b


def _drl_kernel(dilation, halo, t_tile,
                xc_ref, xl_ref, xr_ref, mask_ref, wd_ref, bd_ref, w1_ref, b1_ref,
                o_ref, xwin_ref):
    """One (batch element, time tile) grid step.

    xc_ref   : (1, C, TT)    center time tile (auto-pipelined)
    xl_ref   : (1, C, HALO)  tail of the previous time tile (auto-pipelined, prefetched)
    xr_ref   : (1, C, HALO)  head of the next time tile (auto-pipelined, prefetched)
    mask_ref : (1, 1, TT)    mask[:, 0:1, :] tile
    wd_ref   : (3, C, C)     dilated conv weight, tap-major
    bd_ref   : (C, 1)        dilated conv bias (f32)
    w1_ref   : (C, C)        1x1 conv weight
    b1_ref   : (C, 1)        1x1 conv bias (f32)
    o_ref    : (1, C, TT)    output tile
    xwin_ref : (C, HALO + TT + HALO) VMEM window scratch, compute dtype
    """
    d, H, TT = dilation, halo, t_tile
    t = pl.program_id(1)
    is_first = t == 0
    is_last = t == pl.num_programs(1) - 1

    cd = xwin_ref.dtype                      # compute dtype for the MXU operands
    xc_raw = xc_ref[0]                       # (C, TT) in x dtype (reused for the residual)
    xc = xc_raw.astype(cd)                   # single cast site for the center data

    # --- Fill the window scratch: [ left halo | center tile | right halo ]. -----------
    # Center copy is lane-aligned (H is a multiple of 128).
    xwin_ref[:, pl.ds(H, TT)] = xc
    xl = xl_ref[0].astype(cd)                # (C, H)
    xr = xr_ref[0].astype(cd)                # (C, H)
    # Boundary tiles get the conv's zero padding instead of the (clamped) neighbour data.
    xwin_ref[:, pl.ds(0, H)] = jnp.where(is_first, jnp.zeros_like(xl), xl)
    xwin_ref[:, pl.ds(H + TT, H)] = jnp.where(is_last, jnp.zeros_like(xr), xr)

    # --- Dilated conv: three channel-mixing matmuls on shifted window views. ----------
    # Center tap first (initializes the accumulator; independent of the halo writes).
    acc = jnp.dot(wd_ref[1], xc, preferred_element_type=jnp.float32)
    acc = acc + jnp.dot(wd_ref[0], xwin_ref[:, pl.ds(H - d, TT)],
                        preferred_element_type=jnp.float32)
    acc = acc + jnp.dot(wd_ref[2], xwin_ref[:, pl.ds(H + d, TT)],
                        preferred_element_type=jnp.float32)
    acc = jnp.maximum(acc + bd_ref[...], 0.0)              # bias + ReLU in f32

    # --- 1x1 conv (channel mix), bias, residual, mask. --------------------------------
    out = jnp.dot(w1_ref[...], acc.astype(cd), preferred_element_type=jnp.float32)
    out = out + b1_ref[...]

    # TODO(synk): train-mode stochastic dropout (pltpu.prng_*) not implemented; eval = identity.
    res = (xc_raw.astype(jnp.float32) + out) * mask_ref[0].astype(jnp.float32)
    o_ref[0] = res.astype(o_ref.dtype)


def dilated_residual_layer(x, mask, w_dilated, b_dilated, w_1x1, b_1x1, dilation,
                           *, max_t_tile=2048, compute_dtype=None):
    """x: (N, C, T), mask: (N, Cm, T). Returns (N, C, T) in x.dtype."""
    N, C_in, T = x.shape
    C = w_dilated.shape[0]
    assert C_in == C, "residual connection requires in_channels == out_channels"
    d = int(dilation)
    assert d >= 1
    if compute_dtype is None:
        compute_dtype = x.dtype              # bf16 callers -> bf16 operands, f32 accumulation

    LANE = 128
    HALO = _round_up(d, LANE)                # lane-aligned halo block width (>= dilation)
    # Lane-dense time tile, multiple of HALO so halo blocks tile the time axis exactly.
    TT = min(int(max_t_tile), _round_up(T, LANE))
    TT = _round_up(max(TT, HALO), HALO)
    T_pad = _round_up(T, TT)
    n_t = T_pad // TT
    r = TT // HALO                           # halo blocks per time tile
    last_hblk = T_pad // HALO - 1

    mask0 = mask[:, 0:1, :]
    if T_pad != T:
        # Pad only when T is not tile-aligned (keeps output stores lane-dense).
        x_in = jnp.pad(x, ((0, 0), (0, 0), (0, T_pad - T)))
        mask_in = jnp.pad(mask0, ((0, 0), (0, 0), (0, T_pad - T)))
    else:
        x_in, mask_in = x, mask0

    wd_t = jnp.transpose(w_dilated, (2, 0, 1)).astype(compute_dtype)   # (3, C, C), tap-major
    bd_c = b_dilated.reshape(C, 1).astype(jnp.float32)
    w1_m = w_1x1[:, :, 0].astype(compute_dtype)                        # (C, C)
    b1_c = b_1x1.reshape(C, 1).astype(jnp.float32)

    kernel = functools.partial(_drl_kernel, d, HALO, TT)

    # VMEM budget: double-buffered tiles + weights + window scratch + f32 temporaries.
    itm = jnp.dtype(x.dtype).itemsize
    ctm = jnp.dtype(compute_dtype).itemsize
    mtm = jnp.dtype(mask_in.dtype).itemsize
    est = (2 * C * TT * itm                      # x center tile (double buffered)
           + 4 * C * HALO * itm                  # left/right halo blocks (double buffered)
           + 2 * TT * mtm                        # mask tile
           + 2 * C * TT * itm                    # output tile
           + 2 * (4 * C * C * ctm + 2 * C * 4)   # weights / biases
           + C * (TT + 2 * HALO) * ctm           # window scratch
           + 8 * C * TT * 4)                     # f32 temporaries (acc / operands / result)
    vmem_limit = int(min(max(est + (8 << 20), 32 << 20), 48 << 20))

    out = pl.pallas_call(
        kernel,
        out_shape=jax.ShapeDtypeStruct((N, C, T_pad), x.dtype),
        grid_spec=pltpu.PrefetchScalarGridSpec(
            num_scalar_prefetch=0,
            grid=(N, n_t),
            in_specs=[
                pl.BlockSpec((1, C, TT), lambda n, t: (n, 0, t)),          # x center tile
                pl.BlockSpec((1, C, HALO),                                  # left halo block
                             lambda n, t: (n, 0, jnp.maximum(t * r - 1, 0))),
                pl.BlockSpec((1, C, HALO),                                  # right halo block
                             lambda n, t: (n, 0, jnp.minimum((t + 1) * r, last_hblk))),
                pl.BlockSpec((1, 1, TT), lambda n, t: (n, 0, t)),           # mask row 0 tile
                pl.BlockSpec((3, C, C), lambda n, t: (0, 0, 0)),            # dilated weight
                pl.BlockSpec((C, 1), lambda n, t: (0, 0)),                  # dilated bias
                pl.BlockSpec((C, C), lambda n, t: (0, 0)),                  # 1x1 weight
                pl.BlockSpec((C, 1), lambda n, t: (0, 0)),                  # 1x1 bias
            ],
            out_specs=pl.BlockSpec((1, C, TT), lambda n, t: (n, 0, t)),
            scratch_shapes=[
                pltpu.VMEM((C, TT + 2 * HALO), jnp.dtype(compute_dtype)),   # conv window
            ],
        ),
        compiler_params=pltpu.CompilerParams(
            dimension_semantics=("parallel", "parallel"),
            vmem_limit_bytes=vmem_limit,
        ),
    )(x_in, x_in, x_in, mask_in, wd_t, bd_c, w1_m, b1_c)

    return out if T_pad == T else out[:, :, :T]


def _reference(x, mask, w_dilated, b_dilated, w_1x1, b_1x1, dilation):
    """Pure-JAX reference mirroring the PyTorch module (eval mode)."""
    dn = ("NCH", "OIH", "NCH")
    out = jax.lax.conv_general_dilated(
        x, w_dilated, window_strides=(1,), padding=[(dilation, dilation)],
        rhs_dilation=(dilation,), dimension_numbers=dn)
    out = out + b_dilated[None, :, None]
    out = jnp.maximum(out, 0.0)
    out = jax.lax.conv_general_dilated(
        out, w_1x1, window_strides=(1,), padding=[(0, 0)], dimension_numbers=dn)
    out = out + b_1x1[None, :, None]
    return (x + out) * mask[:, 0:1, :]


if __name__ == "__main__":
    key = jax.random.PRNGKey(0)
    k = jax.random.split(key, 18)

    # Config 1: small shapes from the module spec (single time tile, both halos zeroed).
    N, C, T, dil = 2, 4, 16, 2
    x = jax.random.normal(k[0], (N, C, T), dtype=jnp.float32)
    mask = (jax.random.uniform(k[1], (N, C, T)) > 0.3).astype(jnp.float32)
    w_d = 0.1 * jax.random.normal(k[2], (C, C, 3), dtype=jnp.float32)
    b_d = 0.1 * jax.random.normal(k[3], (C,), dtype=jnp.float32)
    w_1 = 0.1 * jax.random.normal(k[4], (C, C, 1), dtype=jnp.float32)
    b_1 = 0.1 * jax.random.normal(k[5], (C,), dtype=jnp.float32)

    out = jax.block_until_ready(dilated_residual_layer(x, mask, w_d, b_d, w_1, b_1, dil))
    ref = _reference(x, mask, w_d, b_d, w_1, b_1, dil)
    assert out.shape == (N, C, T)
    assert jnp.allclose(out, ref, atol=1e-4, rtol=1e-4), "mismatch vs reference (config 1)"

    # Config 2: several time tiles -> exercises the auto-pipelined halo-block path.
    N2, C2, T2, dil2 = 1, 8, 300, 4
    x2 = jax.random.normal(k[6], (N2, C2, T2), dtype=jnp.float32)
    mask2 = (jax.random.uniform(k[7], (N2, 5, T2)) > 0.3).astype(jnp.float32)
    w_d2 = 0.1 * jax.random.normal(k[8], (C2, C2, 3), dtype=jnp.float32)
    b_d2 = 0.1 * jax.random.normal(k[9], (C2,), dtype=jnp.float32)
    w_12 = 0.1 * jax.random.normal(k[10], (C2, C2, 1), dtype=jnp.float32)
    b_12 = 0.1 * jax.random.normal(k[11], (C2,), dtype=jnp.float32)

    out2 = jax.block_until_ready(
        dilated_residual_layer(x2, mask2, w_d2, b_d2, w_12, b_12, dil2, max_t_tile=128))
    ref2 = _reference(x2, mask2, w_d2, b_d2, w_12, b_12, dil2)
    assert out2.shape == (N2, C2, T2)
    assert jnp.allclose(out2, ref2, atol=1e-4, rtol=1e-4), "mismatch vs reference (config 2)"

    # Config 3: large dilation (dilation == halo width) with multiple tiles and tail padding.
    N3, C3, T3, dil3 = 1, 8, 1500, 128
    x3 = jax.random.normal(k[12], (N3, C3, T3), dtype=jnp.float32)
    mask3 = (jax.random.uniform(k[13], (N3, C3, T3)) > 0.3).astype(jnp.float32)
    w_d3 = 0.1 * jax.random.normal(k[14], (C3, C3, 3), dtype=jnp.float32)
    b_d3 = 0.1 * jax.random.normal(k[15], (C3,), dtype=jnp.float32)
    w_13 = 0.1 * jax.random.normal(k[16], (C3, C3, 1), dtype=jnp.float32)
    b_13 = 0.1 * jax.random.normal(k[17], (C3,), dtype=jnp.float32)

    out3 = jax.block_until_ready(
        dilated_residual_layer(x3, mask3, w_d3, b_d3, w_13, b_13, dil3, max_t_tile=512))
    ref3 = _reference(x3, mask3, w_d3, b_d3, w_13, b_13, dil3)
    assert out3.shape == (N3, C3, T3)
    assert jnp.allclose(out3, ref3, atol=1e-4, rtol=1e-4), "mismatch vs reference (config 3)"

    print("KERNEL_OK")
</pallas_src>

<mosaic_0001>
module attributes {stable_mosaic.version = 11 : i64} {
  func.func @_drl_kernel(%arg0: i32, %arg1: i32, %arg2: memref<1x4x128xf32, #tpu.memory_space<vmem>>, %arg3: memref<1x4x128xf32, #tpu.memory_space<vmem>>, %arg4: memref<1x4x128xf32, #tpu.memory_space<vmem>>, %arg5: memref<1x1x128xf32, #tpu.memory_space<vmem>>, %arg6: memref<3x4x4xf32, #tpu.memory_space<vmem>>, %arg7: memref<4x1xf32, #tpu.memory_space<vmem>>, %arg8: memref<4x4xf32, #tpu.memory_space<vmem>>, %arg9: memref<4x1xf32, #tpu.memory_space<vmem>>, %arg10: memref<1x4x128xf32, #tpu.memory_space<vmem>>, %arg11: memref<4x384xf32, #tpu.memory_space<vmem>>) attributes {dimension_semantics = [#tpu.dimension_semantics<parallel>, #tpu.dimension_semantics<parallel>], iteration_bounds = array<i64: 2, 1>, scalar_prefetch = 0 : i64, scratch_operands = 1 : i64, tpu.core_type = #tpu.core_type<tc>, window_params = [{transform_indices = @transform_0, window_bounds = array<i64: 1, 4, 128>}, {transform_indices = @transform_1, window_bounds = array<i64: 1, 4, 128>}, {transform_indices = @transform_2, window_bounds = array<i64: 1, 4, 128>}, {transform_indices = @transform_3, window_bounds = array<i64: 1, 1, 128>}, {pipeline_mode = #tpu.pipeline_mode<synchronous>, transform_indices = @transform_4, window_bounds = array<i64: 3, 4, 4>}, {pipeline_mode = #tpu.pipeline_mode<synchronous>, transform_indices = @transform_5, window_bounds = array<i64: 4, 1>}, {pipeline_mode = #tpu.pipeline_mode<synchronous>, transform_indices = @transform_6, window_bounds = array<i64: 4, 4>}, {pipeline_mode = #tpu.pipeline_mode<synchronous>, transform_indices = @transform_7, window_bounds = array<i64: 4, 1>}, {transform_indices = @transform_8, window_bounds = array<i64: 1, 4, 128>}]} {
    %c0_i32 = arith.constant 0 : i32
    %0 = arith.cmpi eq, %arg1, %c0_i32 : i32
    %c0_i32_0 = arith.constant 0 : i32
    %1 = arith.cmpi eq, %arg1, %c0_i32_0 : i32
    %c0 = arith.constant 0 : index
    %c0_1 = arith.constant 0 : index
    %c0_2 = arith.constant 0 : index
    %2 = vector.load %arg2[%c0, %c0_1, %c0_2] : memref<1x4x128xf32, #tpu.memory_space<vmem>>, vector<1x4x128xf32>
    %3 = vector.shape_cast %2 : vector<1x4x128xf32> to vector<4x128xf32>
    %c0_3 = arith.constant 0 : index
    %c128 = arith.constant 128 : index
    %4 = vector.load %arg11[%c0_3, %c128] : memref<4x384xf32, #tpu.memory_space<vmem>>, vector<4x128xf32>
    tpu.vector_store %arg11[%c0_3, %c128], %3 {strides = array<i32>} : memref<4x384xf32, #tpu.memory_space<vmem>>, vector<4x128xf32>,
    %c0_4 = arith.constant 0 : index
    %c0_5 = arith.constant 0 : index
    %c0_6 = arith.constant 0 : index
    %5 = vector.load %arg3[%c0_4, %c0_5, %c0_6] : memref<1x4x128xf32, #tpu.memory_space<vmem>>, vector<1x4x128xf32>
    %6 = vector.shape_cast %5 : vector<1x4x128xf32> to vector<4x128xf32>
    %c0_7 = arith.constant 0 : index
    %c0_8 = arith.constant 0 : index
    %c0_9 = arith.constant 0 : index
    %7 = vector.load %arg4[%c0_7, %c0_8, %c0_9] : memref<1x4x128xf32, #tpu.memory_space<vmem>>, vector<1x4x128xf32>
    %8 = vector.shape_cast %7 : vector<1x4x128xf32> to vector<4x128xf32>
    %cst = arith.constant 0.000000e+00 : f32
    %9 = vector.broadcast %cst : f32 to vector<4x128xf32>
    %10 = arith.select %0, %9, %6 : vector<4x128xf32>
    %c0_10 = arith.constant 0 : index
    %c0_11 = arith.constant 0 : index
    %11 = vector.load %arg11[%c0_10, %c0_11] : memref<4x384xf32, #tpu.memory_space<vmem>>, vector<4x128xf32>
    tpu.vector_store %arg11[%c0_10, %c0_11], %10 {strides = array<i32>} : memref<4x384xf32, #tpu.memory_space<vmem>>, vector<4x128xf32>,
    %cst_12 = arith.constant 0.000000e+00 : f32
    %12 = vector.broadcast %cst_12 : f32 to vector<4x128xf32>
    %13 = arith.select %1, %12, %8 : vector<4x128xf32>
    %c0_13 = arith.constant 0 : index
    %c256 = arith.constant 256 : index
    %14 = vector.load %arg11[%c0_13, %c256] : memref<4x384xf32, #tpu.memory_space<vmem>>, vector<4x128xf32>
    tpu.vector_store %arg11[%c0_13, %c256], %13 {strides = array<i32>} : memref<4x384xf32, #tpu.memory_space<vmem>>, vector<4x128xf32>,
    %c1 = arith.constant 1 : index
    %c0_14 = arith.constant 0 : index
    %c0_15 = arith.constant 0 : index
    %15 = vector.load %arg6[%c1, %c0_14, %c0_15] : memref<3x4x4xf32, #tpu.memory_space<vmem>>, vector<1x4x4xf32>
    %16 = vector.shape_cast %15 : vector<1x4x4xf32> to vector<4x4xf32>
    %cst_16 = arith.constant dense<0.000000e+00> : vector<4x128xf32>
    %17 = tpu.matmul %16, %3, %cst_16 {dimension_numbers = #tpu.dot_dimension_numbers<[1], [0], [0], [1], [0, 0, 1, 1], [], []>} : vector<4x4xf32>, vector<4x128xf32>, vector<4x128xf32> -> vector<4x128xf32>
    %c0_17 = arith.constant 0 : index
    %c0_18 = arith.constant 0 : index
    %c0_19 = arith.constant 0 : index
    %18 = vector.load %arg6[%c0_17, %c0_18, %c0_19] : memref<3x4x4xf32, #tpu.memory_space<vmem>>, vector<1x4x4xf32>
    %19 = vector.shape_cast %18 : vector<1x4x4xf32> to vector<4x4xf32>
    %c0_20 = arith.constant 0 : index
    %c126 = arith.constant 126 : index
    %20 = vector.load %arg11[%c0_20, %c126] : memref<4x384xf32, #tpu.memory_space<vmem>>, vector<4x128xf32>
    %cst_21 = arith.constant dense<0.000000e+00> : vector<4x128xf32>
    %21 = tpu.matmul %19, %20, %cst_21 {dimension_numbers = #tpu.dot_dimension_numbers<[1], [0], [0], [1], [0, 0, 1, 1], [], []>} : vector<4x4xf32>, vector<4x128xf32>, vector<4x128xf32> -> vector<4x128xf32>
    %22 = arith.addf %17, %21 : vector<4x128xf32>
    %c2 = arith.constant 2 : index
    %c0_22 = arith.constant 0 : index
    %c0_23 = arith.constant 0 : index
    %23 = vector.load %arg6[%c2, %c0_22, %c0_23] : memref<3x4x4xf32, #tpu.memory_space<vmem>>, vector<1x4x4xf32>
    %24 = vector.shape_cast %23 : vector<1x4x4xf32> to vector<4x4xf32>
    %c0_24 = arith.constant 0 : index
    %c130 = arith.constant 130 : index
    %25 = vector.load %arg11[%c0_24, %c130] : memref<4x384xf32, #tpu.memory_space<vmem>>, vector<4x128xf32>
    %cst_25 = arith.constant dense<0.000000e+00> : vector<4x128xf32>
    %26 = tpu.matmul %24, %25, %cst_25 {dimension_numbers = #tpu.dot_dimension_numbers<[1], [0], [0], [1], [0, 0, 1, 1], [], []>} : vector<4x4xf32>, vector<4x128xf32>, vector<4x128xf32> -> vector<4x128xf32>
    %27 = arith.addf %22, %26 : vector<4x128xf32>
    %c0_26 = arith.constant 0 : index
    %c0_27 = arith.constant 0 : index
    %28 = vector.load %arg7[%c0_26, %c0_27] : memref<4x1xf32, #tpu.memory_space<vmem>>, vector<4x1xf32>
    %29 = vector.broadcast %28 : vector<4x1xf32> to vector<4x128xf32>
    %30 = arith.addf %27, %29 : vector<4x128xf32>
    %cst_28 = arith.constant 0.000000e+00 : f32
    %31 = vector.broadcast %cst_28 : f32 to vector<4x128xf32>
    %32 = arith.maximumf %30, %31 : vector<4x128xf32>
    %c0_29 = arith.constant 0 : index
    %c0_30 = arith.constant 0 : index
    %33 = vector.load %arg8[%c0_29, %c0_30] : memref<4x4xf32, #tpu.memory_space<vmem>>, vector<4x4xf32>
    %cst_31 = arith.constant dense<0.000000e+00> : vector<4x128xf32>
    %34 = tpu.matmul %33, %32, %cst_31 {dimension_numbers = #tpu.dot_dimension_numbers<[1], [0], [0], [1], [0, 0, 1, 1], [], []>} : vector<4x4xf32>, vector<4x128xf32>, vector<4x128xf32> -> vector<4x128xf32>
    %c0_32 = arith.constant 0 : index
    %c0_33 = arith.constant 0 : index
    %35 = vector.load %arg9[%c0_32, %c0_33] : memref<4x1xf32, #tpu.memory_space<vmem>>, vector<4x1xf32>
    %36 = vector.broadcast %35 : vector<4x1xf32> to vector<4x128xf32>
    %37 = arith.addf %34, %36 : vector<4x128xf32>
    %38 = arith.addf %3, %37 : vector<4x128xf32>
    %c0_34 = arith.constant 0 : index
    %c0_35 = arith.constant 0 : index
    %c0_36 = arith.constant 0 : index
    %39 = vector.load %arg5[%c0_34, %c0_35, %c0_36] : memref<1x1x128xf32, #tpu.memory_space<vmem>>, vector<1x1x128xf32>
    %40 = vector.shape_cast %39 : vector<1x1x128xf32> to vector<1x128xf32>
    %41 = vector.broadcast %40 : vector<1x128xf32> to vector<4x128xf32>
    %42 = arith.mulf %38, %41 : vector<4x128xf32>
    %c0_37 = arith.constant 0 : index
    %c0_38 = arith.constant 0 : index
    %c0_39 = arith.constant 0 : index
    %43 = vector.load %arg10[%c0_37, %c0_38, %c0_39] : memref<1x4x128xf32, #tpu.memory_space<vmem>>, vector<1x4x128xf32>
    %44 = vector.shape_cast %43 : vector<1x4x128xf32> to vector<4x128xf32>
    %45 = vector.shape_cast %42 : vector<4x128xf32> to vector<1x4x128xf32>
    tpu.vector_store %arg10[%c0_37, %c0_38, %c0_39], %45 {strides = array<i32>} : memref<1x4x128xf32, #tpu.memory_space<vmem>>, vector<1x4x128xf32>,
    return
  }
  func.func @transform_0(%arg0: i32, %arg1: i32) -> (i32, i32, i32) {
    %c0_i32 = arith.constant 0 : i32
    %c0_i32_0 = arith.constant 0 : i32
    return %arg0, %c0_i32, %arg1 : i32, i32, i32
  }
  func.func @transform_1(%arg0: i32, %arg1: i32) -> (i32, i32, i32) {
    %c1_i32 = arith.constant 1 : i32
    %0 = arith.muli %arg1, %c1_i32 : i32
    %c1_i32_0 = arith.constant 1 : i32
    %1 = arith.subi %0, %c1_i32_0 : i32
    %c0_i32 = arith.constant 0 : i32
    %2 = arith.maxsi %1, %c0_i32 : i32
    %c0_i32_1 = arith.constant 0 : i32
    %c0_i32_2 = arith.constant 0 : i32
    return %arg0, %c0_i32_1, %2 : i32, i32, i32
  }
  func.func @transform_2(%arg0: i32, %arg1: i32) -> (i32, i32, i32) {
    %c1_i32 = arith.constant 1 : i32
    %0 = arith.addi %arg1, %c1_i32 : i32
    %c1_i32_0 = arith.constant 1 : i32
    %1 = arith.muli %0, %c1_i32_0 : i32
    %c0_i32 = arith.constant 0 : i32
    %2 = arith.minsi %1, %c0_i32 : i32
    %c0_i32_1 = arith.constant 0 : i32
    %c0_i32_2 = arith.constant 0 : i32
    return %arg0, %c0_i32_1, %2 : i32, i32, i32
  }
  func.func @transform_3(%arg0: i32, %arg1: i32) -> (i32, i32, i32) {
    %c0_i32 = arith.constant 0 : i32
    %c0_i32_0 = arith.constant 0 : i32
    return %arg0, %c0_i32, %arg1 : i32, i32, i32
  }
  func.func @transform_4(%arg0: i32, %arg1: i32) -> (i32, i32, i32) {
    %c0_i32 = arith.constant 0 : i32
    %c0_i32_0 = arith.constant 0 : i32
    %c0_i32_1 = arith.constant 0 : i32
    %c0_i32_2 = arith.constant 0 : i32
    return %c0_i32, %c0_i32_0, %c0_i32_1 : i32, i32, i32
  }
  func.func @transform_5(%arg0: i32, %arg1: i32) -> (i32, i32) {
    %c0_i32 = arith.constant 0 : i32
    %c0_i32_0 = arith.constant 0 : i32
    %c0_i32_1 = arith.constant 0 : i32
    return %c0_i32, %c0_i32_0 : i32, i32
  }
  func.func @transform_6(%arg0: i32, %arg1: i32) -> (i32, i32) {
    %c0_i32 = arith.constant 0 : i32
    %c0_i32_0 = arith.constant 0 : i32
    %c0_i32_1 = arith.constant 0 : i32
    return %c0_i32, %c0_i32_0 : i32, i32
  }
  func.func @transform_7(%arg0: i32, %arg1: i32) -> (i32, i32) {
    %c0_i32 = arith.constant 0 : i32
    %c0_i32_0 = arith.constant 0 : i32
    %c0_i32_1 = arith.constant 0 : i32
    return %c0_i32, %c0_i32_0 : i32, i32
  }
  func.func @transform_8(%arg0: i32, %arg1: i32) -> (i32, i32, i32) {
    %c0_i32 = arith.constant 0 : i32
    %c0_i32_0 = arith.constant 0 : i32
    return %arg0, %c0_i32, %arg1 : i32, i32, i32
  }
}

</mosaic_0001>

<llo_original>
// kernel: tpu_custom_call.1
$region0: #{tpu_custom_call.1}
  #allocation0 [shape = 'u32[]', space=smem, size = 0x4, offset = 0x4, fixed_abs, tag = 'smem constant byte address 0x4 - core index']
  #allocation1 [shape = 'u32[144,128]{1,0:T(1,128)}', space=vmem, size = 0x12000, scoped, tag = 'internal scratch']
  #allocation2 [shape = 'f32[4,384]{1,0:T(4,128)}', space=vmem, size = 0x1800, scoped, tag = 'scratch operand']
  %s0 = inlined_call_operand.vmem [shape: f32[2,4,128], index: 0, kind: input, shape index: {}]
  %s1 = inlined_call_operand.hbm [shape: f32[2,4,128], index: 1, kind: input, shape index: {}]
  %s2 = inlined_call_operand.hbm [shape: f32[2,4,128], index: 2, kind: input, shape index: {}]
  %s3 = inlined_call_operand.hbm [shape: f32[2,1,128], index: 3, kind: input, shape index: {}]
  %s4 = inlined_call_operand.vmem [shape: f32[3,4,4], index: 4, kind: input, shape index: {}]
  %s5 = inlined_call_operand.vmem [shape: f32[4,1], index: 5, kind: input, shape index: {}]
  %s6 = inlined_call_operand.vmem [shape: f32[4,4], index: 6, kind: input, shape index: {}]
  %s7 = inlined_call_operand.vmem [shape: f32[4,1], index: 7, kind: input, shape index: {}]
  %s8 = inlined_call_operand.hbm [shape: f32[2,4,128], index: 8, kind: output, shape index: {}]
  %s9 = sld [smem:[#allocation0]]
  $region77: #{tpu_custom_call.1} parent=0
    _
  %s11 = ssub.s32 1, %s9
  %s12 = scalar_select 0, %s11, %s9
  $region1: #{tpu_custom_call.1} parent=0
    #allocation3 [shape = 'u8[4096]{0}', space=vmem, size = 0x1000, scoped, tag = 'input window, operand 1']
    #allocation4 [shape = 's32[2]{0}', space=sflag, size = 0x8, scoped, tag = 'scoped memory for tpu_custom_call.1']
    #allocation5 [shape = 's32[2]{0}', space=sflag, size = 0x8, scoped, tag = 'scoped memory for tpu_custom_call.1']
    #allocation6 [shape = 'u8[4096]{0}', space=vmem, size = 0x1000, scoped, tag = 'input window, operand 2']
    #allocation7 [shape = 's32[2]{0}', space=sflag, size = 0x8, scoped, tag = 'scoped memory for tpu_custom_call.1']
    #allocation8 [shape = 'u8[1024]{0}', space=vmem, size = 0x400, scoped, tag = 'input window, operand 3']
    #allocation9 [shape = 'u8[4096]{0}', space=vmem, size = 0x1000, scoped, tag = 'output window, operand 0']
    %13 = vsyncpa [#allocation4], 0
    %s14 = scalar_lea.sflag [#allocation4], 1
    %15 = vsyncpa %s14, 0
    %16 = vsyncpa [#allocation7], 0
    %s17 = scalar_lea.sflag [#allocation7], 1
    %18 = vsyncpa %s17, 0
    %19 = vsyncpa [#allocation5], 0
    %s20 = scalar_lea.sflag [#allocation5], 1
    %21 = vsyncpa %s20, 0
    loop: start=0, step=1, limit=4
    $region2: #{tpu_custom_call.1} parent=1 // loop_pre_header
      _
    $region3: #{tpu_custom_call.1} parent=1 // loop_header
      %s23 = sphi 0, %s27
      %p24 = scmp.ge.s32.totalorder %s23, 4
      %s30 = sphi 0, %s42
      %s31 = sphi 0, %s38
      %s32 = sphi 0, %s30
      %s33 = sphi 0, %s31
      %s34 = sphi 0, %s32
      %s35 = sphi 0, %s33
      %s47 = sphi 0, %s49
      %s50 = sphi 0, %s47
      %s51 = sphi 0, %s50
      %s67 = sphi 0, %s51
      %s81 = sphi 0, %s83
      %s84 = sphi 0, %s81
      %s85 = sphi 0, %s84
      %s101 = sphi 0, %s85
      %s115 = sphi 0, %s117
      %s118 = sphi 0, %s115
      %s119 = sphi 0, %s118
      %s135 = sphi 0, %s119
      %s143 = sphi 0, %s145
      %s146 = sphi 0, %s143
      %s147 = sphi 0, %s146
      %s163 = sphi 0, %s147
      %s167 = sphi 0, %s167
      %s169 = sphi 0, %s167
      %s170 = sphi 0, %s169
      %s184 = sphi 0, %s170
      %s188 = sphi 0, %s188
      %s190 = sphi 0, %s188
      %s191 = sphi 0, %s190
      %s205 = sphi 0, %s191
      %s209 = sphi 0, %s209
      %s211 = sphi 0, %s209
      %s212 = sphi 0, %s211
      %s226 = sphi 0, %s212
      %s230 = sphi 0, %s230
      %s232 = sphi 0, %s230
      %s233 = sphi 0, %s232
      %s247 = sphi 0, %s233
      %s255 = sphi 0, %s257
      %s258 = sphi 0, %s255
      %s259 = sphi 0, %s258
      %s275 = sphi 0, %s259
    $region4: #{tpu_custom_call.1} parent=1 // loop_header_branch
      %26 = sbr.rel (%p24) target = $region8
    $region5: #{tpu_custom_call.1} parent=1 // loop_body
      %s28 = ssub.s32 %s23, 1
      %s29 = ssub.s32 %s23, 2
      %s36 = sadd.s32 1, %s31
      %p37 = scmp.ge.s32.totalorder %s36, 1
      %s38 = scalar_select %p37, 0, %s36
      %s39 = sadd.s32 1, %s30
      %s40 = scalar_select %p37, %s39, %s30
      %p41 = scmp.ge.s32.totalorder %s40, 2
      %s42 = scalar_select %p41, 0, %s40
      %s43 = ssub.s32 %s30, %s42
      %s44 = ssub.s32 %s31, %s38
      %s45 = sor.u32 %s43, %s44
      %p46 = scmp.eq.s32.totalorder %s45, 0
      %s48 = sadd.s32 %s47, 1
      %s49 = scalar_select %p46, %s47, %s48
      %p52 = pneg %p46
      %p53 = scmp.eq.s32.totalorder %s23, 1
      %p54 = por %p52, %p53
      %p55 = scmp.ne.s32.totalorder %s47, %s50
      %p56 = scmp.eq.s32.totalorder %s23, 0
      %p57 = por %p55, %p56
      %p58 = scmp.ne.s32.totalorder %s47, %s50
      %p59 = scmp.eq.s32.totalorder %s28, 1
      %p60 = por %p58, %p59
      %p61 = scmp.ne.s32.totalorder %s50, %s51
      %p62 = scmp.eq.s32.totalorder %s28, 0
      %p63 = por %p61, %p62
      %p64 = scmp.ne.s32.totalorder %s50, %s51
      %p65 = scmp.eq.s32.totalorder %s29, 1
      %p66 = por %p64, %p65
      %p68 = scmp.ne.s32.totalorder %s51, %s67
      %p69 = scmp.eq.s32.totalorder %s29, 0
      %p70 = por %p68, %p69
      %s71 = ssub.s32 %s31, 1
      %p72 = scmp.gt.s32.totalorder %s71, 0
      %s73 = scalar_select %p72, %s71, 0
      %s74 = ssub.s32 %s38, 1
      %p75 = scmp.gt.s32.totalorder %s74, 0
      %s76 = scalar_select %p75, %s74, 0
      %s77 = ssub.s32 %s30, %s42
      %s78 = ssub.s32 %s73, %s76
      %s79 = sor.u32 %s77, %s78
      %p80 = scmp.eq.s32.totalorder %s79, 0
      %s82 = sadd.s32 %s81, 1
      %s83 = scalar_select %p80, %s81, %s82
      %p86 = pneg %p80
      %p87 = scmp.eq.s32.totalorder %s23, 1
      %p88 = por %p86, %p87
      %p89 = scmp.ne.s32.totalorder %s81, %s84
      %p90 = scmp.eq.s32.totalorder %s23, 0
      %p91 = por %p89, %p90
      %p92 = scmp.ne.s32.totalorder %s81, %s84
      %p93 = scmp.eq.s32.totalorder %s28, 1
      %p94 = por %p92, %p93
      %p95 = scmp.ne.s32.totalorder %s84, %s85
      %p96 = scmp.eq.s32.totalorder %s28, 0
      %p97 = por %p95, %p96
      %p98 = scmp.ne.s32.totalorder %s84, %s85
      %p99 = scmp.eq.s32.totalorder %s29, 1
      %p100 = por %p98, %p99
      %p102 = scmp.ne.s32.totalorder %s85, %s101
      %p103 = scmp.eq.s32.totalorder %s29, 0
      %p104 = por %p102, %p103
      %s105 = sadd.s32 %s31, 1
      %p106 = scmp.lt.s32.totalorder %s105, 0
      %s107 = scalar_select %p106, %s105, 0
      %s108 = sadd.s32 %s38, 1
      %p109 = scmp.lt.s32.totalorder %s108, 0
      %s110 = scalar_select %p109, %s108, 0
      %s111 = ssub.s32 %s30, %s42
      %s112 = ssub.s32 %s107, %s110
      %s113 = sor.u32 %s111, %s112
      %p114 = scmp.eq.s32.totalorder %s113, 0
      %s116 = sadd.s32 %s115, 1
      %s117 = scalar_select %p114, %s115, %s116
      %p120 = pneg %p114
      %p121 = scmp.eq.s32.totalorder %s23, 1
      %p122 = por %p120, %p121
      %p123 = scmp.ne.s32.totalorder %s115, %s118
      %p124 = scmp.eq.s32.totalorder %s23, 0
      %p125 = por %p123, %p124
      %p126 = scmp.ne.s32.totalorder %s115, %s118
      %p127 = scmp.eq.s32.totalorder %s28, 1
      %p128 = por %p126, %p127
      %p129 = scmp.ne.s32.totalorder %s118, %s119
      %p130 = scmp.eq.s32.totalorder %s28, 0
      %p131 = por %p129, %p130
      %p132 = scmp.ne.s32.totalorder %s118, %s119
      %p133 = scmp.eq.s32.totalorder %s29, 1
      %p134 = por %p132, %p133
      %p136 = scmp.ne.s32.totalorder %s119, %s135
      %p137 = scmp.eq.s32.totalorder %s29, 0
      %p138 = por %p136, %p137
      %s139 = ssub.s32 %s30, %s42
      %s140 = ssub.s32 %s31, %s38
      %s141 = sor.u32 %s139, %s140
      %p142 = scmp.eq.s32.totalorder %s141, 0
      %s144 = sadd.s32 %s143, 1
      %s145 = scalar_select %p142, %s143, %s144
      %p148 = pneg %p142
      %p149 = scmp.eq.s32.totalorder %s23, 1
      %p150 = por %p148, %p149
      %p151 = scmp.ne.s32.totalorder %s143, %s146
      %p152 = scmp.eq.s32.totalorder %s23, 0
      %p153 = por %p151, %p152
      %p154 = scmp.ne.s32.totalorder %s143, %s146
      %p155 = scmp.eq.s32.totalorder %s28, 1
      %p156 = por %p154, %p155
      %p157 = scmp.ne.s32.totalorder %s146, %s147
      %p158 = scmp.eq.s32.totalorder %s28, 0
      %p159 = por %p157, %p158
      %p160 = scmp.ne.s32.totalorder %s146, %s147
      %p161 = scmp.eq.s32.totalorder %s29, 1
      %p162 = por %p160, %p161
      %p164 = scmp.ne.s32.totalorder %s147, %s163
      %p165 = scmp.eq.s32.totalorder %s29, 0
      %p166 = por %p164, %p165
      %s168 = sadd.s32 %s167, 1
      %p171 = scmp.eq.s32.totalorder %s23, 1
      %p172 = scmp.ne.s32.totalorder %s167, %s169
      %p173 = scmp.eq.s32.totalorder %s23, 0
      %p174 = por %p172, %p173
      %p175 = scmp.ne.s32.totalorder %s167, %s169
      %p176 = scmp.eq.s32.totalorder %s28, 1
      %p177 = por %p175, %p176
      %p178 = scmp.ne.s32.totalorder %s169, %s170
      %p179 = scmp.eq.s32.totalorder %s28, 0
      %p180 = por %p178, %p179
      %p181 = scmp.ne.s32.totalorder %s169, %s170
      %p182 = scmp.eq.s32.totalorder %s29, 1
      %p183 = por %p181, %p182
      %p185 = scmp.ne.s32.totalorder %s170, %s184
      %p186 = scmp.eq.s32.totalorder %s29, 0
      %p187 = por %p185, %p186
      %s189 = sadd.s32 %s188, 1
      %p192 = scmp.eq.s32.totalorder %s23, 1
      %p193 = scmp.ne.s32.totalorder %s188, %s190
      %p194 = scmp.eq.s32.totalorder %s23, 0
      %p195 = por %p193, %p194
      %p196 = scmp.ne.s32.totalorder %s188, %s190
      %p197 = scmp.eq.s32.totalorder %s28, 1
      %p198 = por %p196, %p197
      %p199 = scmp.ne.s32.totalorder %s190, %s191
      %p200 = scmp.eq.s32.totalorder %s28, 0
      %p201 = por %p199, %p200
      %p202 = scmp.ne.s32.totalorder %s190, %s191
      %p203 = scmp.eq.s32.totalorder %s29, 1
      %p204 = por %p202, %p203
      %p206 = scmp.ne.s32.totalorder %s191, %s205
      %p207 = scmp.eq.s32.totalorder %s29, 0
      %p208 = por %p206, %p207
      %s210 = sadd.s32 %s209, 1
      %p213 = scmp.eq.s32.totalorder %s23, 1
      %p214 = scmp.ne.s32.totalorder %s209, %s211
      %p215 = scmp.eq.s32.totalorder %s23, 0
      %p216 = por %p214, %p215
      %p217 = scmp.ne.s32.totalorder %s209, %s211
      %p218 = scmp.eq.s32.totalorder %s28, 1
      %p219 = por %p217, %p218
      %p220 = scmp.ne.s32.totalorder %s211, %s212
      %p221 = scmp.eq.s32.totalorder %s28, 0
      %p222 = por %p220, %p221
      %p223 = scmp.ne.s32.totalorder %s211, %s212
      %p224 = scmp.eq.s32.totalorder %s29, 1
      %p225 = por %p223, %p224
      %p227 = scmp.ne.s32.totalorder %s212, %s226
      %p228 = scmp.eq.s32.totalorder %s29, 0
      %p229 = por %p227, %p228
      %s231 = sadd.s32 %s230, 1
      %p234 = scmp.eq.s32.totalorder %s23, 1
      %p235 = scmp.ne.s32.totalorder %s230, %s232
      %p236 = scmp.eq.s32.totalorder %s23, 0
      %p237 = por %p235, %p236
      %p238 = scmp.ne.s32.totalorder %s230, %s232
      %p239 = scmp.eq.s32.totalorder %s28, 1
      %p240 = por %p238, %p239
      %p241 = scmp.ne.s32.totalorder %s232, %s233
      %p242 = scmp.eq.s32.totalorder %s28, 0
      %p243 = por %p241, %p242
      %p244 = scmp.ne.s32.totalorder %s232, %s233
      %p245 = scmp.eq.s32.totalorder %s29, 1
      %p246 = por %p244, %p245
      %p248 = scmp.ne.s32.totalorder %s233, %s247
      %p249 = scmp.eq.s32.totalorder %s29, 0
      %p250 = por %p248, %p249
      %s251 = ssub.s32 %s30, %s42
      %s252 = ssub.s32 %s31, %s38
      %s253 = sor.u32 %s251, %s252
      %p254 = scmp.eq.s32.totalorder %s253, 0
      %s256 = sadd.s32 %s255, 1
      %s257 = scalar_select %p254, %s255, %s256
      %p260 = pneg %p254
      %p261 = scmp.eq.s32.totalorder %s23, 1
      %p262 = por %p260, %p261
      %p263 = scmp.ne.s32.totalorder %s255, %s258
      %p264 = scmp.eq.s32.totalorder %s23, 0
      %p265 = por %p263, %p264
      %p266 = scmp.ne.s32.totalorder %s255, %s258
      %p267 = scmp.eq.s32.totalorder %s28, 1
      %p268 = por %p266, %p267
      %p269 = scmp.ne.s32.totalorder %s258, %s259
      %p270 = scmp.eq.s32.totalorder %s28, 0
      %p271 = por %p269, %p270
      %p272 = scmp.ne.s32.totalorder %s258, %s259
      %p273 = scmp.eq.s32.totalorder %s29, 1
      %p274 = por %p272, %p273
      %p276 = scmp.ne.s32.totalorder %s259, %s275
      %p277 = scmp.eq.s32.totalorder %s29, 0
      %p278 = por %p276, %p277
      %p279 = scmp.le.s32.totalorder 1, %s23
      %p280 = scmp.lt.s32.totalorder %s23, 3
      %p281 = pnand %p279, %p280
      %p282 = pneg %p281
      // Predicated region
      $region9: #{tpu_custom_call.1} parent=5 // pred_check
        _
      $region10: #{tpu_custom_call.1} parent=5 // pred_check_branch
        %284 = sbr.rel (%p281) target = $region12
      $region11: #{tpu_custom_call.1} parent=5 // pred_region
        %s285 = ssub.s32 %s23, 1
        // Predicated region
        $region13: #{tpu_custom_call.1} parent=11 // pred_check
          %p286 = pneg %p180
        $region14: #{tpu_custom_call.1} parent=11 // pred_check_branch
          %288 = sbr.rel (%p286) target = $region16
        $region15: #{tpu_custom_call.1} parent=11 // pred_region
          _
        $region16: #{tpu_custom_call.1} parent=11 // pred_fallthru
          _
        // Predicated region
        $region17: #{tpu_custom_call.1} parent=11 // pred_check
          %p289 = pneg %p201
        $region18: #{tpu_custom_call.1} parent=11 // pred_check_branch
          %291 = sbr.rel (%p289) target = $region20
        $region19: #{tpu_custom_call.1} parent=11 // pred_region
          _
        $region20: #{tpu_custom_call.1} parent=11 // pred_fallthru
          _
        // Predicated region
        $region21: #{tpu_custom_call.1} parent=11 // pred_check
          %p292 = pneg %p222
        $region22: #{tpu_custom_call.1} parent=11 // pred_check_branch
          %294 = sbr.rel (%p292) target = $region24
        $region23: #{tpu_custom_call.1} parent=11 // pred_region
          _
        $region24: #{tpu_custom_call.1} parent=11 // pred_fallthru
          _
        // Predicated region
        $region25: #{tpu_custom_call.1} parent=11 // pred_check
          %p295 = pneg %p243
        $region26: #{tpu_custom_call.1} parent=11 // pred_check_branch
          %297 = sbr.rel (%p295) target = $region28
        $region27: #{tpu_custom_call.1} parent=11 // pred_region
          _
        $region28: #{tpu_custom_call.1} parent=11 // pred_fallthru
          _
      $region12: #{tpu_custom_call.1} parent=5 // pred_fallthru
        _
      %p298 = scmp.lt.s32.totalorder %s23, 2
      // Predicated region
      $region29: #{tpu_custom_call.1} parent=5 // pred_check
        %p299 = pneg %p298
      $region30: #{tpu_custom_call.1} parent=5 // pred_check_branch
        %301 = sbr.rel (%p299) target = $region32
      $region31: #{tpu_custom_call.1} parent=5 // pred_region
        // Predicated region
        $region33: #{tpu_custom_call.1} parent=31 // pred_check
          %p302 = pneg %p57
        $region34: #{tpu_custom_call.1} parent=31 // pred_check_branch
          %304 = sbr.rel (%p302) target = $region36
        $region35: #{tpu_custom_call.1} parent=31 // pred_region
          %p305 = scmp.lt.s32.totalorder %s30, 1
          %s306 = scalar_select %p305, %s30, 1
          %p307 = scmp.lt.s32.totalorder %s31, 0
          %s308 = scalar_select %p307, %s31, 0
          %s309 = sadd.s32 %s308, %s306
          %s310 = smul.addr %s309, 4
          %s311 = scalar_lea.vmem %s0, %s310
        $region36: #{tpu_custom_call.1} parent=31 // pred_fallthru
          _
        // Predicated region
        $region37: #{tpu_custom_call.1} parent=31 // pred_check
          %p312 = pneg %p91
        $region38: #{tpu_custom_call.1} parent=31 // pred_check_branch
          %314 = sbr.rel (%p312) target = $region40
        $region39: #{tpu_custom_call.1} parent=31 // pred_region
          %s315 = sand.u32 %s81, 1
          %s316 = scalar_lea.sflag [#allocation4], %s315
          %s317 = sand.u32 %s81, 1
          %s318 = smul.addr %s317, 4
          %s319 = scalar_lea.vmem [#allocation3], %s318
          %s320 = ssub.s32 %s31, 1
          %p321 = scmp.gt.s32.totalorder %s320, 0
          %s322 = scalar_select %p321, %s320, 0
          %s324 = ssub.s32 64, 64
          %325 = vsyncadd %s316, %s324
          %s326 = sadd.s32 %s322, %s30
          %s327 = smul.addr %s326, 64
          %s328 = scalar_lea.hbm %s1, %s327
          %s330 = sshll.u32 %s319, 4
          %s331 = int_to_ptr.vmem [resolvable:$true] %s330
          %333 = dma.hbm_to_vmem [thread:$0]  %s328, 64, %s331, %s316
        $region40: #{tpu_custom_call.1} parent=31 // pred_fallthru
          _
        // Predicated region
        $region41: #{tpu_custom_call.1} parent=31 // pred_check
          %p334 = pneg %p125
        $region42: #{tpu_custom_call.1} parent=31 // pred_check_branch
          %336 = sbr.rel (%p334) target = $region44
        $region43: #{tpu_custom_call.1} parent=31 // pred_region
          %s337 = sand.u32 %s23, 1
          %s338 = scalar_lea.sflag [#allocation7], %s337
          %s339 = sand.u32 %s115, 1
          %s340 = smul.addr %s339, 4
          %s341 = scalar_lea.vmem [#allocation6], %s340
          %s342 = sadd.s32 %s31, 1
          %p343 = scmp.lt.s32.totalorder %s342, 0
          %s344 = scalar_select %p343, %s342, 0
          %s346 = ssub.s32 64, 64
          %347 = vsyncadd %s338, %s346
          %s348 = sadd.s32 %s344, %s30
          %s349 = smul.addr %s348, 64
          %s350 = scalar_lea.hbm %s2, %s349
          %s352 = sshll.u32 %s341, 4
          %s353 = int_to_ptr.vmem [resolvable:$true] %s352
          %355 = dma.hbm_to_vmem [thread:$0]  %s350, 64, %s353, %s338
        $region44: #{tpu_custom_call.1} parent=31 // pred_fallthru
          _
        // Predicated region
        $region45: #{tpu_custom_call.1} parent=31 // pred_check
          %p356 = pneg %p153
        $region46: #{tpu_custom_call.1} parent=31 // pred_check_branch
          %358 = sbr.rel (%p356) target = $region48
        $region47: #{tpu_custom_call.1} parent=31 // pred_region
          %s359 = sand.u32 %s23, 1
          %s360 = scalar_lea.sflag [#allocation7], %s359
          %s361 = sand.u32 %s143, 1
          %s362 = scalar_lea.vmem [#allocation8], %s361
          %s364 = ssub.s32 16, 16
          %365 = vsyncadd %s360, %s364
          %s366 = sadd.s32 %s31, %s30
          %s367 = smul.addr %s366, 16
          %s368 = scalar_lea.hbm %s3, %s367
          %s370 = sshll.u32 %s362, 4
          %s371 = int_to_ptr.vmem [resolvable:$true] %s370
          %373 = dma.hbm_to_vmem [thread:$0]  %s368, 16, %s371, %s360
        $region48: #{tpu_custom_call.1} parent=31 // pred_fallthru
          _
      $region32: #{tpu_custom_call.1} parent=5 // pred_fallthru
        _
      %p374 = scmp.le.s32.totalorder 1, %s23
      %p375 = scmp.lt.s32.totalorder %s23, 3
      %p376 = pnand %p374, %p375
      %p377 = pneg %p376
      // Predicated region
      $region49: #{tpu_custom_call.1} parent=5 // pred_check
        _
      $region50: #{tpu_custom_call.1} parent=5 // pred_check_branch
        %379 = sbr.rel (%p376) target = $region52
      $region51: #{tpu_custom_call.1} parent=5 // pred_region
        %s380 = ssub.s32 %s23, 1
        %s381 = sand.u32 %s84, 1
        %s382 = scalar_lea.sflag [#allocation4], %s381
        %s383 = sand.u32 %s84, 1
        %s384 = smul.addr %s383, 4
        %s385 = scalar_lea.vmem [#allocation3], %s384
        // Predicated region
        $region53: #{tpu_custom_call.1} parent=51 // pred_check
          %p386 = pneg %p97
        $region54: #{tpu_custom_call.1} parent=51 // pred_check_branch
          %388 = sbr.rel (%p386) target = $region56
        $region55: #{tpu_custom_call.1} parent=51 // pred_region
          %389 = dma.done %s382, 64
        $region56: #{tpu_custom_call.1} parent=51 // pred_fallthru
          _
        %s390 = sand.u32 %s28, 1
        %s391 = scalar_lea.sflag [#allocation7], %s390
        %s392 = sand.u32 %s118, 1
        %s393 = smul.addr %s392, 4
        %s394 = scalar_lea.vmem [#allocation6], %s393
        // Predicated region
        $region57: #{tpu_custom_call.1} parent=51 // pred_check
          %p395 = pneg %p131
        $region58: #{tpu_custom_call.1} parent=51 // pred_check_branch
          %397 = sbr.rel (%p395) target = $region60
        $region59: #{tpu_custom_call.1} parent=51 // pred_region
          %398 = dma.done %s391, 64
        $region60: #{tpu_custom_call.1} parent=51 // pred_fallthru
          _
        %s399 = sand.u32 %s28, 1
        %s400 = scalar_lea.sflag [#allocation7], %s399
        %s401 = sand.u32 %s146, 1
        %s402 = scalar_lea.vmem [#allocation8], %s401
        // Predicated region
        $region61: #{tpu_custom_call.1} parent=51 // pred_check
          %p403 = pneg %p159
        $region62: #{tpu_custom_call.1} parent=51 // pred_check_branch
          %405 = sbr.rel (%p403) target = $region64
        $region63: #{tpu_custom_call.1} parent=51 // pred_region
          %406 = dma.done %s400, 16
        $region64: #{tpu_custom_call.1} parent=51 // pred_fallthru
          _
        %p407 = scmp.lt.s32.totalorder %s32, 1
        %s408 = scalar_select %p407, %s32, 1
        %p409 = scmp.lt.s32.totalorder %s33, 0
        %s410 = scalar_select %p409, %s33, 0
        %s411 = sadd.s32 %s410, %s408
        %s412 = smul.addr %s411, 4
        %s413 = scalar_lea.vmem %s0, %s412
        %p414 = pneg %p63
        %p415 = pneg %p60
        %s416 = sand.u32 %s84, 1
        %s417 = scalar_lea.sflag [#allocation4], %s416
        %s418 = sand.u32 %s84, 1
        %s419 = smul.addr %s418, 4
        %s420 = scalar_lea.vmem [#allocation3], %s419
        %p421 = pneg %p97
        %p422 = pneg %p94
        %s423 = sand.u32 %s28, 1
        %s424 = scalar_lea.sflag [#allocation7], %s423
        %s425 = sand.u32 %s118, 1
        %s426 = smul.addr %s425, 4
        %s427 = scalar_lea.vmem [#allocation6], %s426
        %p428 = pneg %p131
        %p429 = pneg %p128
        %s430 = sand.u32 %s28, 1
        %s431 = scalar_lea.sflag [#allocation7], %s430
        %s432 = sand.u32 %s146, 1
        %s433 = scalar_lea.vmem [#allocation8], %s432
        %p434 = pneg %p159
        %p435 = pneg %p156
        %p436 = pneg %p180
        %p437 = pneg %p177
        %p438 = pneg %p201
        %p439 = pneg %p198
        %p440 = pneg %p222
        %p441 = pneg %p219
        %p442 = pneg %p243
        %p443 = pneg %p240
        %p444 = pneg %p271
        %p445 = pneg %p268
        %s446 = sand.u32 %s258, 1
        %s447 = scalar_lea.sflag [#allocation5], %s446
        %s448 = sand.u32 %s258, 1
        %s449 = smul.addr %s448, 4
        %s450 = scalar_lea.vmem [#allocation9], %s449
        %p451 = scmp.lt.s32.totalorder %s32, 1
        %s452 = scalar_select %p451, %s32, 1
        %p453 = scmp.lt.s32.totalorder %s33, 0
        %s454 = scalar_select %p453, %s33, 0
        %s455 = sadd.s32 %s454, %s452
        %s456 = smul.addr %s455, 4
        %s457 = scalar_lea.vmem %s0, %s456
        %s458 = ssub.s32 %s33, 1
        %p459 = scmp.gt.s32.totalorder %s458, 0
        %s460 = scalar_select %p459, %s458, 0
        %s461 = sadd.s32 %s33, 1
        %p462 = scmp.lt.s32.totalorder %s461, 0
        %s463 = scalar_select %p462, %s461, 0
        %p464 = scmp.eq.s32.totalorder %s33, 0
        %v465 = vld [vmem:[%s457] sm:$0xf]
        %466 = vst [vmem:[#allocation2 + $0x4] sm:$0xf] %v465
        %v467 = vld [vmem:[%s385] sm:$0xf]
        %v468 = vld [vmem:[%s394] sm:$0xf]
        %s469 = scalar_select %p464, 1, 0
        %v470 = vstv %s469
        %vm471 = vcmp.eq.s32.totalorder %v470, 1
        %v472 = vsel %vm471, 0.0, %v467
        %473 = vst [vmem:[#allocation2] sm:$0xf] %v472
        %v474 = vsel %vm471, 0.0, %v468
        %475 = vst [vmem:[#allocation2 + $0x8] sm:$0xf] %v474
        %s476 = scalar_lea.vmem %s4, 4
        %v477 = vld [vmem:[%s476] sm:$0xf]
        %v478 = vld [vmem:[%s4] sm:$0xf]
        %v479 = vld [vmem:[#allocation2] sm:$0xff]
        %v481 = vcombine.high %v479, %v479
        %482 = vrot.lane.b32.xlu0 %v479, 2
        %v483 = vpop.permute.xlu0 %482
        %484 = vrot.lane.b32.xlu0 %v481, 2
        %v485 = vpop.permute.xlu0 %484
        %vm486 = vcmask 15360
        %v487 = vsel %vm486, %v483, %v485
        %vm488 = vcmask 31744
        %v490 = vsel %vm488, %v478, 0
        %vm492 = vcmask 1043456
        %v493 = vsel %vm492, %v487, 0
        %495 = vmatprep.subr.mxu0 0.0
        %496 = vmatpush1.msra.mxu0 %v493
        %497 = vmatprep.subr.mxu0 0.0
        %498 = vmatpush1.msra.mxu0 0.0
        %499 = vmatprep.subr.mxu0 0.0
        %500 = vmatpush1.msra.mxu0 0.0
        %501 = vmatprep.subr.mxu0 0.0
        %502 = vmatpush1.msra.mxu0 0.0
        %503 = vmatprep.subr.mxu0 0.0
        %504 = vmatpush1.msra.mxu0 0.0
        %505 = vmatprep.subr.mxu0 0.0
        %506 = vmatpush1.msra.mxu0 0.0
        %507 = vmatprep.subr.mxu0 0.0
        %508 = vmatpush1.msra.mxu0 0.0
        %509 = vmatprep.subr.mxu0 0.0
        %510 = vmatpush1.msra.mxu0 0.0
        %511 = vmatprep.subr.mxu0 0.0
        %512 = vmatpush1.msra.mxu0 0.0
        %513 = vmatprep.subr.mxu0 0.0
        %514 = vmatpush1.msra.mxu0 0.0
        %515 = vmatprep.subr.mxu0 0.0
        %516 = vmatpush1.msra.mxu0 0.0
        %517 = vmatprep.subr.mxu0 0.0
        %518 = vmatpush1.msra.mxu0 0.0
        %519 = vmatprep.subr.mxu0 0.0
        %520 = vmatpush1.msra.mxu0 0.0
        %521 = vmatprep.subr.mxu0 0.0
        %522 = vmatpush1.msra.mxu0 0.0
        %523 = vmatprep.subr.mxu0 0.0
        %524 = vmatpush1.msra.mxu0 0.0
        %525 = vmatprep.subr.mxu0 0.0
        %526 = vmatpush1.msra.mxu0 0.0
        %527 = vmatprep.subr.mxu0 0.0
        %528 = vmatpush1.msra.mxu0 0.0
        %529 = vmatprep.subr.mxu0 0.0
        %530 = vmatpush1.msra.mxu0 0.0
        %531 = vmatprep.subr.mxu0 0.0
        %532 = vmatpush1.msra.mxu0 0.0
        %533 = vmatprep.subr.mxu0 0.0
        %534 = vmatpush1.msra.mxu0 0.0
        %535 = vmatprep.subr.mxu0 0.0
        %536 = vmatpush1.msra.mxu0 0.0
        %537 = vmatprep.subr.mxu0 0.0
        %538 = vmatpush1.msra.mxu0 0.0
        %539 = vmatprep.subr.mxu0 0.0
        %540 = vmatpush1.msra.mxu0 0.0
        %541 = vmatprep.subr.mxu0 0.0
        %542 = vmatpush1.msra.mxu0 0.0
        %543 = vmatprep.subr.mxu0 0.0
        %544 = vmatpush1.msra.mxu0 0.0
        %545 = vmatprep.subr.mxu0 0.0
        %546 = vmatpush1.msra.mxu0 0.0
        %547 = vmatprep.subr.mxu0 0.0
        %548 = vmatpush1.msra.mxu0 0.0
        %549 = vmatprep.subr.mxu0 0.0
        %550 = vmatpush1.msra.mxu0 0.0
        %551 = vmatprep.subr.mxu0 0.0
        %552 = vmatpush1.msra.mxu0 0.0
        %553 = vmatprep.subr.mxu0 0.0
        %554 = vmatpush1.msra.mxu0 0.0
        %555 = vmatprep.subr.mxu0 0.0
        %556 = vmatpush1.msra.mxu0 0.0
        %557 = vmatprep.subr.mxu0 0.0
        %558 = vmatpush1.msra.mxu0 0.0
        %559 = vmatprep.mubr.f32.mxu0 0.0
        %560 = vmatmul.mubr.f32.gmra.mrb[0].mxu0 %v490
        %v561 = vpop.f32.mrb[0].mxu0
        %v562 = vadd.f32 0.0, %v561
        %v563 = vpop.f32.mrb[0].mxu0
        %564 = vdwg.mxu0
        %v566 = vsel %vm488, %v477, 0
        %v569 = vsel %vm492, %v465, 0
        %571 = vmatprep.subr.mxu0 0.0
        %572 = vmatpush1.msra.mxu0 %v569
        %573 = vmatprep.subr.mxu0 0.0
        %574 = vmatpush1.msra.mxu0 0.0
        %575 = vmatprep.subr.mxu0 0.0
        %576 = vmatpush1.msra.mxu0 0.0
        %577 = vmatprep.subr.mxu0 0.0
        %578 = vmatpush1.msra.mxu0 0.0
        %579 = vmatprep.subr.mxu0 0.0
        %580 = vmatpush1.msra.mxu0 0.0
        %581 = vmatprep.subr.mxu0 0.0
        %582 = vmatpush1.msra.mxu0 0.0
        %583 = vmatprep.subr.mxu0 0.0
        %584 = vmatpush1.msra.mxu0 0.0
        %585 = vmatprep.subr.mxu0 0.0
        %586 = vmatpush1.msra.mxu0 0.0
        %587 = vmatprep.subr.mxu0 0.0
        %588 = vmatpush1.msra.mxu0 0.0
        %589 = vmatprep.subr.mxu0 0.0
        %590 = vmatpush1.msra.mxu0 0.0
        %591 = vmatprep.subr.mxu0 0.0
        %592 = vmatpush1.msra.mxu0 0.0
        %593 = vmatprep.subr.mxu0 0.0
        %594 = vmatpush1.msra.mxu0 0.0
        %595 = vmatprep.subr.mxu0 0.0
        %596 = vmatpush1.msra.mxu0 0.0
        %597 = vmatprep.subr.mxu0 0.0
        %598 = vmatpush1.msra.mxu0 0.0
        %599 = vmatprep.subr.mxu0 0.0
        %600 = vmatpush1.msra.mxu0 0.0
        %601 = vmatprep.subr.mxu0 0.0
        %602 = vmatpush1.msra.mxu0 0.0
        %603 = vmatprep.subr.mxu0 0.0
        %604 = vmatpush1.msra.mxu0 0.0
        %605 = vmatprep.subr.mxu0 0.0
        %606 = vmatpush1.msra.mxu0 0.0
        %607 = vmatprep.subr.mxu0 0.0
        %608 = vmatpush1.msra.mxu0 0.0
        %609 = vmatprep.subr.mxu0 0.0
        %610 = vmatpush1.msra.mxu0 0.0
        %611 = vmatprep.subr.mxu0 0.0
        %612 = vmatpush1.msra.mxu0 0.0
        %613 = vmatprep.subr.mxu0 0.0
        %614 = vmatpush1.msra.mxu0 0.0
        %615 = vmatprep.subr.mxu0 0.0
        %616 = vmatpush1.msra.mxu0 0.0
        %617 = vmatprep.subr.mxu0 0.0
        %618 = vmatpush1.msra.mxu0 0.0
        %619 = vmatprep.subr.mxu0 0.0
        %620 = vmatpush1.msra.mxu0 0.0
        %621 = vmatprep.subr.mxu0 0.0
        %622 = vmatpush1.msra.mxu0 0.0
        %623 = vmatprep.subr.mxu0 0.0
        %624 = vmatpush1.msra.mxu0 0.0
        %625 = vmatprep.subr.mxu0 0.0
        %626 = vmatpush1.msra.mxu0 0.0
        %627 = vmatprep.subr.mxu0 0.0
        %628 = vmatpush1.msra.mxu0 0.0
        %629 = vmatprep.subr.mxu0 0.0
        %630 = vmatpush1.msra.mxu0 0.0
        %631 = vmatprep.subr.mxu0 0.0
        %632 = vmatpush1.msra.mxu0 0.0
        %633 = vmatprep.subr.mxu0 0.0
        %634 = vmatpush1.msra.mxu0 0.0
        %635 = vmatprep.mubr.f32.mxu0 0.0
        %636 = vmatmul.mubr.f32.gmra.mrb[0].mxu0 %v566
        %v637 = vpop.f32.mrb[0].mxu0
        %v638 = vadd.f32 %v562, %v637
        %v639 = vpop.f32.mrb[0].mxu0
        %640 = vdwg.mxu0
        %s641 = scalar_lea.vmem %s4, 8
        %v642 = vld [vmem:[%s641] sm:$0xf]
        %v643 = vld [vmem:[#allocation2 + $0x4] sm:$0xff]
        %v645 = vcombine.high %v643, %v643
        %646 = vrot.lane.b32.xlu0 %v643, 126
        %v647 = vpop.permute.xlu0 %646
        %648 = vrot.lane.b32.xlu0 %v645, 126
        %v649 = vpop.permute.xlu0 %648
        %vm650 = vcmask 1031168
        %v651 = vsel %vm650, %v647, %v649
        %v653 = vsel %vm488, %v642, 0
        %v655 = vsel %vm492, %v651, 0
        %657 = vmatprep.subr.mxu0 0.0
        %658 = vmatpush1.msra.mxu0 %v655
        %659 = vmatprep.subr.mxu0 0.0
        %660 = vmatpush1.msra.mxu0 0.0
        %661 = vmatprep.subr.mxu0 0.0
        %662 = vmatpush1.msra.mxu0 0.0
        %663 = vmatprep.subr.mxu0 0.0
        %664 = vmatpush1.msra.mxu0 0.0
        %665 = vmatprep.subr.mxu0 0.0
        %666 = vmatpush1.msra.mxu0 0.0
        %667 = vmatprep.subr.mxu0 0.0
        %668 = vmatpush1.msra.mxu0 0.0
        %669 = vmatprep.subr.mxu0 0.0
        %670 = vmatpush1.msra.mxu0 0.0
        %671 = vmatprep.subr.mxu0 0.0
        %672 = vmatpush1.msra.mxu0 0.0
        %673 = vmatprep.subr.mxu0 0.0
        %674 = vmatpush1.msra.mxu0 0.0
        %675 = vmatprep.subr.mxu0 0.0
        %676 = vmatpush1.msra.mxu0 0.0
        %677 = vmatprep.subr.mxu0 0.0
        %678 = vmatpush1.msra.mxu0 0.0
        %679 = vmatprep.subr.mxu0 0.0
        %680 = vmatpush1.msra.mxu0 0.0
        %681 = vmatprep.subr.mxu0 0.0
        %682 = vmatpush1.msra.mxu0 0.0
        %683 = vmatprep.subr.mxu0 0.0
        %684 = vmatpush1.msra.mxu0 0.0
        %685 = vmatprep.subr.mxu0 0.0
        %686 = vmatpush1.msra.mxu0 0.0
        %687 = vmatprep.subr.mxu0 0.0
        %688 = vmatpush1.msra.mxu0 0.0
        %689 = vmatprep.subr.mxu0 0.0
        %690 = vmatpush1.msra.mxu0 0.0
        %691 = vmatprep.subr.mxu0 0.0
        %692 = vmatpush1.msra.mxu0 0.0
        %693 = vmatprep.subr.mxu0 0.0
        %694 = vmatpush1.msra.mxu0 0.0
        %695 = vmatprep.subr.mxu0 0.0
        %696 = vmatpush1.msra.mxu0 0.0
        %697 = vmatprep.subr.mxu0 0.0
        %698 = vmatpush1.msra.mxu0 0.0
        %699 = vmatprep.subr.mxu0 0.0
        %700 = vmatpush1.msra.mxu0 0.0
        %701 = vmatprep.subr.mxu0 0.0
        %702 = vmatpush1.msra.mxu0 0.0
        %703 = vmatprep.subr.mxu0 0.0
        %704 = vmatpush1.msra.mxu0 0.0
        %705 = vmatprep.subr.mxu0 0.0
        %706 = vmatpush1.msra.mxu0 0.0
        %707 = vmatprep.subr.mxu0 0.0
        %708 = vmatpush1.msra.mxu0 0.0
        %709 = vmatprep.subr.mxu0 0.0
        %710 = vmatpush1.msra.mxu0 0.0
        %711 = vmatprep.subr.mxu0 0.0
        %712 = vmatpush1.msra.mxu0 0.0
        %713 = vmatprep.subr.mxu0 0.0
        %714 = vmatpush1.msra.mxu0 0.0
        %715 = vmatprep.subr.mxu0 0.0
        %716 = vmatpush1.msra.mxu0 0.0
        %717 = vmatprep.subr.mxu0 0.0
        %718 = vmatpush1.msra.mxu0 0.0
        %719 = vmatprep.subr.mxu0 0.0
        %720 = vmatpush1.msra.mxu0 0.0
        %721 = vmatprep.mubr.f32.mxu0 0.0
        %722 = vmatmul.mubr.f32.gmra.mrb[0].mxu0 %v653
        %v723 = vpop.f32.mrb[0].mxu0
        %v724 = vadd.f32 0.0, %v723
        %v725 = vpop.f32.mrb[0].mxu0
        %726 = vdwg.mxu0
        %v727 = vadd.f32 %v638, %v724
        %v728 = vld [vmem:[%s5] sm:$0xf]
        %730 = vset.pattern.permute.xlu0 0
        %731 = vperm.xlu0 %730, %v728
        %v732 = vpop.permute.xlu0 %731
        %v734 = vadd.f32 %v727, %v732
        %v735 = vmax.f32 %v734, 0.0
        %v736 = vld [vmem:[%s6] sm:$0xf]
        %v737 = vld [vmem:[%s7] sm:$0xf]
        %739 = vset.pattern.permute.xlu0 0
        %740 = vperm.xlu0 %739, %v737
        %v741 = vpop.permute.xlu0 %740
        %v744 = vsel %vm488, %v736, 0
        %v747 = vsel %vm492, %v735, 0
        %749 = vmatprep.subr.mxu0 0.0
        %750 = vmatpush1.msra.mxu0 %v747
        %751 = vmatprep.subr.mxu0 0.0
        %752 = vmatpush1.msra.mxu0 0.0
        %753 = vmatprep.subr.mxu0 0.0
        %754 = vmatpush1.msra.mxu0 0.0
        %755 = vmatprep.subr.mxu0 0.0
        %756 = vmatpush1.msra.mxu0 0.0
        %757 = vmatprep.subr.mxu0 0.0
        %758 = vmatpush1.msra.mxu0 0.0
        %759 = vmatprep.subr.mxu0 0.0
        %760 = vmatpush1.msra.mxu0 0.0
        %761 = vmatprep.subr.mxu0 0.0
        %762 = vmatpush1.msra.mxu0 0.0
        %763 = vmatprep.subr.mxu0 0.0
        %764 = vmatpush1.msra.mxu0 0.0
        %765 = vmatprep.subr.mxu0 0.0
        %766 = vmatpush1.msra.mxu0 0.0
        %767 = vmatprep.subr.mxu0 0.0
        %768 = vmatpush1.msra.mxu0 0.0
        %769 = vmatprep.subr.mxu0 0.0
        %770 = vmatpush1.msra.mxu0 0.0
        %771 = vmatprep.subr.mxu0 0.0
        %772 = vmatpush1.msra.mxu0 0.0
        %773 = vmatprep.subr.mxu0 0.0
        %774 = vmatpush1.msra.mxu0 0.0
        %775 = vmatprep.subr.mxu0 0.0
        %776 = vmatpush1.msra.mxu0 0.0
        %777 = vmatprep.subr.mxu0 0.0
        %778 = vmatpush1.msra.mxu0 0.0
        %779 = vmatprep.subr.mxu0 0.0
        %780 = vmatpush1.msra.mxu0 0.0
        %781 = vmatprep.subr.mxu0 0.0
        %782 = vmatpush1.msra.mxu0 0.0
        %783 = vmatprep.subr.mxu0 0.0
        %784 = vmatpush1.msra.mxu0 0.0
        %785 = vmatprep.subr.mxu0 0.0
        %786 = vmatpush1.msra.mxu0 0.0
        %787 = vmatprep.subr.mxu0 0.0
        %788 = vmatpush1.msra.mxu0 0.0
        %789 = vmatprep.subr.mxu0 0.0
        %790 = vmatpush1.msra.mxu0 0.0
        %791 = vmatprep.subr.mxu0 0.0
        %792 = vmatpush1.msra.mxu0 0.0
        %793 = vmatprep.subr.mxu0 0.0
        %794 = vmatpush1.msra.mxu0 0.0
        %795 = vmatprep.subr.mxu0 0.0
        %796 = vmatpush1.msra.mxu0 0.0
        %797 = vmatprep.subr.mxu0 0.0
        %798 = vmatpush1.msra.mxu0 0.0
        %799 = vmatprep.subr.mxu0 0.0
        %800 = vmatpush1.msra.mxu0 0.0
        %801 = vmatprep.subr.mxu0 0.0
        %802 = vmatpush1.msra.mxu0 0.0
        %803 = vmatprep.subr.mxu0 0.0
        %804 = vmatpush1.msra.mxu0 0.0
        %805 = vmatprep.subr.mxu0 0.0
        %806 = vmatpush1.msra.mxu0 0.0
        %807 = vmatprep.subr.mxu0 0.0
        %808 = vmatpush1.msra.mxu0 0.0
        %809 = vmatprep.subr.mxu0 0.0
        %810 = vmatpush1.msra.mxu0 0.0
        %811 = vmatprep.subr.mxu0 0.0
        %812 = vmatpush1.msra.mxu0 0.0
        %813 = vmatprep.mubr.f32.mxu0 0.0
        %814 = vmatmul.mubr.f32.gmra.mrb[0].mxu0 %v744
        %v815 = vpop.f32.mrb[0].mxu0
        %v816 = vadd.f32 %v741, %v815
        %v817 = vpop.f32.mrb[0].mxu0
        %818 = vdwg.mxu0
        %v819 = vadd.f32 %v465, %v816
        %v820 = vld [vmem:[%s402] sm:$0x1]
        %v822 = vlaneseq
        %v823 = vshrl.u32 %v822, 7
        %v824 = vsub.s32 0, %v823
        %v825 = vrot.slane %v820, %v824
        %v827 = vmul.f32 %v819, %v825
        %828 = vst [vmem:[%s450] sm:$0xf] %v827
        %s829 = sand.u32 %s258, 1
        %s830 = scalar_lea.sflag [#allocation5], %s829
        %s831 = sand.u32 %s258, 1
        %s832 = smul.addr %s831, 4
        %s833 = scalar_lea.vmem [#allocation9], %s832
        // Predicated region
        $region65: #{tpu_custom_call.1} parent=51 // pred_check
          %p834 = pneg %p268
        $region66: #{tpu_custom_call.1} parent=51 // pred_check_branch
          %836 = sbr.rel (%p834) target = $region68
        $region67: #{tpu_custom_call.1} parent=51 // pred_region
          %s838 = ssub.s32 64, 64
          %839 = vsyncadd %s830, %s838
          %s840 = sadd.s32 %s33, %s32
          %s841 = smul.addr %s840, 64
          %s842 = scalar_lea.hbm %s8, %s841
          %s844 = sshll.u32 %s833, 4
          %s845 = int_to_ptr.vmem [resolvable:$true] %s844
          %847 = dma.vmem_to_hbm [thread:$0]  %s845, 64, %s842, %s830
        $region68: #{tpu_custom_call.1} parent=51 // pred_fallthru
          _
      $region52: #{tpu_custom_call.1} parent=5 // pred_fallthru
        _
      %p848 = scmp.le.s32.totalorder 2, %s23
      // Predicated region
      $region69: #{tpu_custom_call.1} parent=5 // pred_check
        %p849 = pneg %p848
      $region70: #{tpu_custom_call.1} parent=5 // pred_check_branch
        %851 = sbr.rel (%p849) target = $region72
      $region71: #{tpu_custom_call.1} parent=5 // pred_region
        %s852 = ssub.s32 %s23, 2
        // Predicated region
        $region73: #{tpu_custom_call.1} parent=71 // pred_check
          %p853 = pneg %p274
        $region74: #{tpu_custom_call.1} parent=71 // pred_check_branch
          %855 = sbr.rel (%p853) target = $region76
        $region75: #{tpu_custom_call.1} parent=71 // pred_region
          %s856 = sand.u32 %s259, 1
          %s857 = scalar_lea.sflag [#allocation5], %s856
          %s858 = sand.u32 %s259, 1
          %s859 = smul.addr %s858, 4
          %s860 = scalar_lea.vmem [#allocation9], %s859
          %861 = dma.done %s857, 64
        $region76: #{tpu_custom_call.1} parent=71 // pred_fallthru
          _
      $region72: #{tpu_custom_call.1} parent=5 // pred_fallthru
        _
    $region6: #{tpu_custom_call.1} parent=1 // loop_footer
      %s27 = sadd.s32 1, %s23
    $region7: #{tpu_custom_call.1} parent=1 // loop_footer_branch
      %22 = sbr.rel target = $region3
    $region8: #{tpu_custom_call.1} parent=1 // loop_exit
      _
    %862 = vsyncpa [#allocation4], 1
    %s863 = scalar_lea.sflag [#allocation4], 1
    %864 = vsyncpa %s863, 1
    %865 = vsyncpa [#allocation7], 1
    %s866 = scalar_lea.sflag [#allocation7], 1
    %867 = vsyncpa %s866, 1
    %868 = vsyncpa [#allocation5], 1
    %s869 = scalar_lea.sflag [#allocation5], 1
    %870 = vsyncpa %s869, 1

</llo_original>
